<compile_context>
chip_gen: v6e
topology: v6e:2x2x1
jax: 0.10.0
libtpu: 0.0.40
codegen_flags: <defaults>
</compile_context>

<pallas_src>
import jax
import jax.numpy as jnp
from jax import lax
from jax.experimental import pallas as pl
from jax.experimental.pallas import tpu as pltpu


def _ffn_kernel(x_ref, w1_ref, b1_ref, w2_ref, b2_ref, gamma_ref, beta_ref, o_ref):
    # Residual path stays in the input precision promoted to f32.
    x_f32 = x_ref[...].astype(jnp.float32)                        # (tm, D)
    x_bf16 = x_ref[...].astype(jnp.bfloat16)                      # MXU operand

    # Conv1d(model_dim -> ffn_dim, k=1): contract D of x with D of w1 (w1 is (F, D)).
    h = lax.dot_general(
        x_bf16, w1_ref[...],
        dimension_numbers=(((1,), (1,)), ((), ())),
        preferred_element_type=jnp.float32)                       # (tm, F) f32 acc
    h = jnp.maximum(h + b1_ref[...], 0.0)                         # bias + ReLU

    # Conv1d(ffn_dim -> model_dim, k=1): contract F of h with F of w2 (w2 is (D, F)).
    y = lax.dot_general(
        h.astype(jnp.bfloat16), w2_ref[...],
        dimension_numbers=(((1,), (1,)), ((), ())),
        preferred_element_type=jnp.float32)                       # (tm, D) f32 acc
    y = y + b2_ref[...]

    # dropout(p=0.0) == identity; residual + LayerNorm over last dim, all f32.
    r = x_f32 + y
    mean = jnp.mean(r, axis=-1, keepdims=True)
    cent = r - mean
    var = jnp.mean(cent * cent, axis=-1, keepdims=True)
    normed = cent * lax.rsqrt(var + 1e-5)
    o_ref[...] = (normed * gamma_ref[...] + beta_ref[...]).astype(o_ref.dtype)


def positional_wise_feed_forward(x, w1, b1, w2, b2, gamma, beta, *, tm=512):
    """x: (B, L, D).
    w1: (ffn_dim, model_dim), b1: (ffn_dim,)   [Conv1d(model->ffn, k=1) weight squeezed]
    w2: (model_dim, ffn_dim), b2: (model_dim,) [Conv1d(ffn->model, k=1) weight squeezed]
    gamma/beta: (model_dim,) LayerNorm affine params.
    """
    B, L, D = x.shape
    F_ = w1.shape[0]
    M = B * L

    # Row tile: multiple of 8, no larger than needed, capped at tm (default 512).
    tm_eff = min(((tm + 7) // 8) * 8, ((M + 7) // 8) * 8)
    grid_m = pl.cdiv(M, tm_eff)
    M_pad = grid_m * tm_eff

    x2d = x.reshape(M, D)
    if M_pad != M:
        x2d = jnp.pad(x2d, ((0, M_pad - M), (0, 0)))

    # bf16 weights (single cast, no host-side transpose); f32 bias / affine params.
    w1_bf = w1.astype(jnp.bfloat16)                 # (F, D)
    w2_bf = w2.astype(jnp.bfloat16)                 # (D, F)
    b1_2d = b1.reshape(1, F_).astype(jnp.float32)
    b2_2d = b2.reshape(1, D).astype(jnp.float32)
    g_2d = gamma.reshape(1, D).astype(jnp.float32)
    be_2d = beta.reshape(1, D).astype(jnp.float32)

    out2d = pl.pallas_call(
        _ffn_kernel,
        out_shape=jax.ShapeDtypeStruct((M_pad, D), x.dtype),
        grid_spec=pltpu.PrefetchScalarGridSpec(
            num_scalar_prefetch=0,
            grid=(grid_m,),
            in_specs=[
                pl.BlockSpec((tm_eff, D), lambda i: (i, 0)),   # x rows (streamed)
                pl.BlockSpec((F_, D), lambda i: (0, 0)),       # w1 (resident, bf16)
                pl.BlockSpec((1, F_), lambda i: (0, 0)),       # b1
                pl.BlockSpec((D, F_), lambda i: (0, 0)),       # w2 (resident, bf16)
                pl.BlockSpec((1, D), lambda i: (0, 0)),        # b2
                pl.BlockSpec((1, D), lambda i: (0, 0)),        # gamma
                pl.BlockSpec((1, D), lambda i: (0, 0)),        # beta
            ],
            out_specs=pl.BlockSpec((tm_eff, D), lambda i: (i, 0)),
        ),
        compiler_params=pltpu.CompilerParams(
            dimension_semantics=("parallel",),
            vmem_limit_bytes=64 * 1024 * 1024),
    )(x2d, w1_bf, b1_2d, w2_bf, b2_2d, g_2d, be_2d)

    if M_pad != M:
        out2d = out2d[:M]
    return out2d.reshape(B, L, D)


def _reference(x, w1, b1, w2, b2, gamma, beta):
    h = jnp.maximum(jnp.einsum("bld,fd->blf", x, w1) + b1, 0.0)
    y = jnp.einsum("blf,df->bld", h, w2) + b2
    r = x + y
    mean = jnp.mean(r, axis=-1, keepdims=True)
    var = jnp.mean((r - mean) ** 2, axis=-1, keepdims=True)
    return (r - mean) * lax.rsqrt(var + 1e-5) * gamma + beta


def _make_params(key, D, F_):
    k1, kb1, k2, kb2, kg, kb = jax.random.split(key, 6)
    w1 = jax.random.normal(k1, (F_, D), dtype=jnp.float32) * 0.05
    b1 = jax.random.normal(kb1, (F_,), dtype=jnp.float32) * 0.05
    w2 = jax.random.normal(k2, (D, F_), dtype=jnp.float32) * 0.05
    b2 = jax.random.normal(kb2, (D,), dtype=jnp.float32) * 0.05
    gamma = 1.0 + 0.1 * jax.random.normal(kg, (D,), dtype=jnp.float32)
    beta = 0.1 * jax.random.normal(kb, (D,), dtype=jnp.float32)
    return w1, b1, w2, b2, gamma, beta


if __name__ == "__main__":
    key = jax.random.PRNGKey(0)
    kp, kx1, kx2 = jax.random.split(key, 3)

    # Small shapes consistent with the module (model_dim on lanes, ffn_dim expansion).
    D, F_ = 128, 256
    w1, b1, w2, b2, gamma, beta = _make_params(kp, D, F_)

    # Test 1: clean tile fit (B=2, L=8 -> M=16).
    x1 = jax.random.normal(kx1, (2, 8, D), dtype=jnp.float32)
    out1 = jax.block_until_ready(
        positional_wise_feed_forward(x1, w1, b1, w2, b2, gamma, beta))
    ref1 = _reference(x1, w1, b1, w2, b2, gamma, beta)
    assert out1.shape == x1.shape
    assert jnp.allclose(out1, ref1, atol=3e-2, rtol=3e-2), "mismatch vs reference (test 1)"

    # Test 2: M not a multiple of the row tile -> exercises padding + slice.
    x2 = jax.random.normal(kx2, (1, 12, D), dtype=jnp.float32)
    out2 = jax.block_until_ready(
        positional_wise_feed_forward(x2, w1, b1, w2, b2, gamma, beta))
    ref2 = _reference(x2, w1, b1, w2, b2, gamma, beta)
    assert out2.shape == x2.shape
    assert jnp.allclose(out2, ref2, atol=3e-2, rtol=3e-2), "mismatch vs reference (test 2)"

    print("KERNEL_OK")
</pallas_src>

<mosaic_0001>
module attributes {stable_mosaic.version = 11 : i64} {
  func.func @_ffn_kernel(%arg0: i32, %arg1: memref<16x128xf32, #tpu.memory_space<vmem>>, %arg2: memref<256x128xbf16, #tpu.memory_space<vmem>>, %arg3: memref<1x256xf32, #tpu.memory_space<vmem>>, %arg4: memref<128x256xbf16, #tpu.memory_space<vmem>>, %arg5: memref<1x128xf32, #tpu.memory_space<vmem>>, %arg6: memref<1x128xf32, #tpu.memory_space<vmem>>, %arg7: memref<1x128xf32, #tpu.memory_space<vmem>>, %arg8: memref<16x128xf32, #tpu.memory_space<vmem>>) attributes {dimension_semantics = [#tpu.dimension_semantics<parallel>], iteration_bounds = array<i64: 1>, scalar_prefetch = 0 : i64, scratch_operands = 0 : i64, tpu.core_type = #tpu.core_type<tc>, window_params = [{transform_indices = @transform_0, window_bounds = array<i64: 16, 128>}, {pipeline_mode = #tpu.pipeline_mode<synchronous>, transform_indices = @transform_1, window_bounds = array<i64: 256, 128>}, {pipeline_mode = #tpu.pipeline_mode<synchronous>, transform_indices = @transform_2, window_bounds = array<i64: 1, 256>}, {pipeline_mode = #tpu.pipeline_mode<synchronous>, transform_indices = @transform_3, window_bounds = array<i64: 128, 256>}, {pipeline_mode = #tpu.pipeline_mode<synchronous>, transform_indices = @transform_4, window_bounds = array<i64: 1, 128>}, {pipeline_mode = #tpu.pipeline_mode<synchronous>, transform_indices = @transform_5, window_bounds = array<i64: 1, 128>}, {pipeline_mode = #tpu.pipeline_mode<synchronous>, transform_indices = @transform_6, window_bounds = array<i64: 1, 128>}, {transform_indices = @transform_7, window_bounds = array<i64: 16, 128>}]} {
    %c0 = arith.constant 0 : index
    %c0_0 = arith.constant 0 : index
    %0 = vector.load %arg1[%c0, %c0_0] : memref<16x128xf32, #tpu.memory_space<vmem>>, vector<16x128xf32>
    %c0_1 = arith.constant 0 : index
    %c0_2 = arith.constant 0 : index
    %1 = vector.load %arg1[%c0_1, %c0_2] : memref<16x128xf32, #tpu.memory_space<vmem>>, vector<16x128xf32>
    %2 = arith.truncf %1 : vector<16x128xf32> to vector<16x128xbf16>
    %c0_3 = arith.constant 0 : index
    %c0_4 = arith.constant 0 : index
    %3 = vector.load %arg2[%c0_3, %c0_4] : memref<256x128xbf16, #tpu.memory_space<vmem>>, vector<256x128xbf16>
    %cst = arith.constant dense<0.000000e+00> : vector<16x256xf32>
    %4 = tpu.matmul %2, %3, %cst {dimension_numbers = #tpu.dot_dimension_numbers<[1], [1], [0], [0], [0, 0, 1, 0], [], []>} : vector<16x128xbf16>, vector<256x128xbf16>, vector<16x256xf32> -> vector<16x256xf32>
    %c0_5 = arith.constant 0 : index
    %c0_6 = arith.constant 0 : index
    %5 = vector.load %arg3[%c0_5, %c0_6] : memref<1x256xf32, #tpu.memory_space<vmem>>, vector<1x256xf32>
    %6 = vector.broadcast %5 : vector<1x256xf32> to vector<16x256xf32>
    %7 = arith.addf %4, %6 : vector<16x256xf32>
    %cst_7 = arith.constant 0.000000e+00 : f32
    %8 = vector.broadcast %cst_7 : f32 to vector<16x256xf32>
    %9 = arith.maximumf %7, %8 : vector<16x256xf32>
    %10 = arith.truncf %9 : vector<16x256xf32> to vector<16x256xbf16>
    %c0_8 = arith.constant 0 : index
    %c0_9 = arith.constant 0 : index
    %11 = vector.load %arg4[%c0_8, %c0_9] : memref<128x256xbf16, #tpu.memory_space<vmem>>, vector<128x256xbf16>
    %cst_10 = arith.constant dense<0.000000e+00> : vector<16x128xf32>
    %12 = tpu.matmul %10, %11, %cst_10 {dimension_numbers = #tpu.dot_dimension_numbers<[1], [1], [0], [0], [0, 0, 1, 0], [], []>} : vector<16x256xbf16>, vector<128x256xbf16>, vector<16x128xf32> -> vector<16x128xf32>
    %c0_11 = arith.constant 0 : index
    %c0_12 = arith.constant 0 : index
    %13 = vector.load %arg5[%c0_11, %c0_12] : memref<1x128xf32, #tpu.memory_space<vmem>>, vector<1x128xf32>
    %14 = vector.broadcast %13 : vector<1x128xf32> to vector<16x128xf32>
    %15 = arith.addf %12, %14 : vector<16x128xf32>
    %16 = arith.addf %0, %15 : vector<16x128xf32>
    %cst_13 = arith.constant dense<0.000000e+00> : vector<16xf32>
    %17 = vector.multi_reduction <add>, %16, %cst_13 [1] : vector<16x128xf32> to vector<16xf32>
    %18 = vector.shape_cast %17 : vector<16xf32> to vector<16x1xf32>
    %cst_14 = arith.constant 1.280000e+02 : f32
    %19 = vector.broadcast %cst_14 : f32 to vector<16x1xf32>
    %20 = arith.divf %18, %19 : vector<16x1xf32>
    %21 = vector.broadcast %20 : vector<16x1xf32> to vector<16x128xf32>
    %22 = arith.subf %16, %21 : vector<16x128xf32>
    %23 = arith.mulf %22, %22 : vector<16x128xf32>
    %cst_15 = arith.constant dense<0.000000e+00> : vector<16xf32>
    %24 = vector.multi_reduction <add>, %23, %cst_15 [1] : vector<16x128xf32> to vector<16xf32>
    %25 = vector.shape_cast %24 : vector<16xf32> to vector<16x1xf32>
    %cst_16 = arith.constant 1.280000e+02 : f32
    %26 = vector.broadcast %cst_16 : f32 to vector<16x1xf32>
    %27 = arith.divf %25, %26 : vector<16x1xf32>
    %cst_17 = arith.constant 9.99999974E-6 : f32
    %28 = vector.broadcast %cst_17 : f32 to vector<16x1xf32>
    %29 = arith.addf %27, %28 : vector<16x1xf32>
    %30 = math.rsqrt %29 : vector<16x1xf32>
    %31 = vector.broadcast %30 : vector<16x1xf32> to vector<16x128xf32>
    %32 = arith.mulf %22, %31 : vector<16x128xf32>
    %c0_18 = arith.constant 0 : index
    %c0_19 = arith.constant 0 : index
    %33 = vector.load %arg6[%c0_18, %c0_19] : memref<1x128xf32, #tpu.memory_space<vmem>>, vector<1x128xf32>
    %34 = vector.broadcast %33 : vector<1x128xf32> to vector<16x128xf32>
    %35 = arith.mulf %32, %34 : vector<16x128xf32>
    %c0_20 = arith.constant 0 : index
    %c0_21 = arith.constant 0 : index
    %36 = vector.load %arg7[%c0_20, %c0_21] : memref<1x128xf32, #tpu.memory_space<vmem>>, vector<1x128xf32>
    %37 = vector.broadcast %36 : vector<1x128xf32> to vector<16x128xf32>
    %38 = arith.addf %35, %37 : vector<16x128xf32>
    %c0_22 = arith.constant 0 : index
    %c0_23 = arith.constant 0 : index
    %39 = vector.load %arg8[%c0_22, %c0_23] : memref<16x128xf32, #tpu.memory_space<vmem>>, vector<16x128xf32>
    tpu.vector_store %arg8[%c0_22, %c0_23], %38 {strides = array<i32>} : memref<16x128xf32, #tpu.memory_space<vmem>>, vector<16x128xf32>,
    return
  }
  func.func @transform_0(%arg0: i32) -> (i32, i32) {
    %c0_i32 = arith.constant 0 : i32
    %c0_i32_0 = arith.constant 0 : i32
    return %arg0, %c0_i32 : i32, i32
  }
  func.func @transform_1(%arg0: i32) -> (i32, i32) {
    %c0_i32 = arith.constant 0 : i32
    %c0_i32_0 = arith.constant 0 : i32
    %c0_i32_1 = arith.constant 0 : i32
    return %c0_i32, %c0_i32_0 : i32, i32
  }
  func.func @transform_2(%arg0: i32) -> (i32, i32) {
    %c0_i32 = arith.constant 0 : i32
    %c0_i32_0 = arith.constant 0 : i32
    %c0_i32_1 = arith.constant 0 : i32
    return %c0_i32, %c0_i32_0 : i32, i32
  }
  func.func @transform_3(%arg0: i32) -> (i32, i32) {
    %c0_i32 = arith.constant 0 : i32
    %c0_i32_0 = arith.constant 0 : i32
    %c0_i32_1 = arith.constant 0 : i32
    return %c0_i32, %c0_i32_0 : i32, i32
  }
  func.func @transform_4(%arg0: i32) -> (i32, i32) {
    %c0_i32 = arith.constant 0 : i32
    %c0_i32_0 = arith.constant 0 : i32
    %c0_i32_1 = arith.constant 0 : i32
    return %c0_i32, %c0_i32_0 : i32, i32
  }
  func.func @transform_5(%arg0: i32) -> (i32, i32) {
    %c0_i32 = arith.constant 0 : i32
    %c0_i32_0 = arith.constant 0 : i32
    %c0_i32_1 = arith.constant 0 : i32
    return %c0_i32, %c0_i32_0 : i32, i32
  }
  func.func @transform_6(%arg0: i32) -> (i32, i32) {
    %c0_i32 = arith.constant 0 : i32
    %c0_i32_0 = arith.constant 0 : i32
    %c0_i32_1 = arith.constant 0 : i32
    return %c0_i32, %c0_i32_0 : i32, i32
  }
  func.func @transform_7(%arg0: i32) -> (i32, i32) {
    %c0_i32 = arith.constant 0 : i32
    %c0_i32_0 = arith.constant 0 : i32
    return %arg0, %c0_i32 : i32, i32
  }
}

</mosaic_0001>

<llo_original>
// kernel: tpu_custom_call.1
$region0: #{tpu_custom_call.1}
  #allocation0 [shape = 'u32[]', space=smem, size = 0x4, offset = 0x4, fixed_abs, tag = 'smem constant byte address 0x4 - core index']
  #allocation1 [shape = 'u32[144,128]{1,0:T(1,128)}', space=vmem, size = 0x12000, scoped, tag = 'internal scratch']
  %s0 = inlined_call_operand.hbm [shape: f32[16,128], index: 0, kind: input, shape index: {}]
  %s1 = inlined_call_operand.hbm [shape: bf16[256,128], index: 1, kind: input, shape index: {}]
  %s2 = inlined_call_operand.vmem [shape: f32[1,256], index: 2, kind: input, shape index: {}]
  %s3 = inlined_call_operand.hbm [shape: bf16[128,256], index: 3, kind: input, shape index: {}]
  %s4 = inlined_call_operand.vmem [shape: f32[1,128], index: 4, kind: input, shape index: {}]
  %s5 = inlined_call_operand.vmem [shape: f32[1,128], index: 5, kind: input, shape index: {}]
  %s6 = inlined_call_operand.vmem [shape: f32[1,128], index: 6, kind: input, shape index: {}]
  %s7 = inlined_call_operand.hbm [shape: f32[16,128], index: 7, kind: output, shape index: {}]
  %s8 = sld [smem:[#allocation0]]
  $region50: #{tpu_custom_call.1} parent=0
    _
  %s10 = ssub.s32 1, %s8
  %s11 = scalar_select 0, %s10, %s8
  $region1: #{tpu_custom_call.1} parent=0
    #allocation2 [shape = 'u8[8192]{0}', space=vmem, size = 0x2000, scoped, tag = 'input window, operand 0, single buffered']
    #allocation3 [shape = 's32[1]{0}', space=sflag, size = 0x4, scoped, tag = 'scoped memory for tpu_custom_call.1']
    #allocation4 [shape = 's32[1]{0}', space=sflag, size = 0x4, scoped, tag = 'scoped memory for tpu_custom_call.1']
    #allocation5 [shape = 'u8[65536]{0}', space=vmem, size = 0x10000, scoped, tag = 'input window, operand 1, single buffered']
    #allocation6 [shape = 's32[1]{0}', space=sflag, size = 0x4, scoped, tag = 'scoped memory for tpu_custom_call.1']
    #allocation7 [shape = 'u8[65536]{0}', space=vmem, size = 0x10000, scoped, tag = 'input window, operand 3, single buffered']
    #allocation8 [shape = 'u8[8192]{0}', space=vmem, size = 0x2000, scoped, tag = 'output window, operand 0, single buffered']
    %12 = vsyncpa [#allocation3], 0
    %13 = vsyncpa [#allocation6], 0
    %14 = vsyncpa [#allocation4], 0
    // Predicated region
    $region2: #{tpu_custom_call.1} parent=1 // pred_check
      _
    $region3: #{tpu_custom_call.1} parent=1 // pred_check_branch
      %16 = sbr.rel (0) target = $region5
    $region4: #{tpu_custom_call.1} parent=1 // pred_region
      %s18 = ssub.s32 256, 256
      %19 = vsyncadd [#allocation3], %s18
      %s20 = sshll.u32 [#allocation2], 4
      %s21 = int_to_ptr.vmem [resolvable:$true] %s20
      %26 = dma.hbm_to_vmem [thread:$0]  %s0, 256, %s21, [#allocation3], 128, 128, 8
    $region5: #{tpu_custom_call.1} parent=1 // pred_fallthru
      _
    // Predicated region
    $region6: #{tpu_custom_call.1} parent=1 // pred_check
      _
    $region7: #{tpu_custom_call.1} parent=1 // pred_check_branch
      %28 = sbr.rel (0) target = $region9
    $region8: #{tpu_custom_call.1} parent=1 // pred_region
      %s30 = ssub.s32 2048, 2048
      %31 = vsyncadd [#allocation6], %s30
      %s32 = sshll.u32 [#allocation5], 4
      %s33 = int_to_ptr.vmem [resolvable:$true] %s32
      %38 = dma.hbm_to_vmem [thread:$0]  %s1, 2048, %s33, [#allocation6], 64, 64, 4
    $region9: #{tpu_custom_call.1} parent=1 // pred_fallthru
      _
    // Predicated region
    $region10: #{tpu_custom_call.1} parent=1 // pred_check
      _
    $region11: #{tpu_custom_call.1} parent=1 // pred_check_branch
      %40 = sbr.rel (0) target = $region13
    $region12: #{tpu_custom_call.1} parent=1 // pred_region
      _
    $region13: #{tpu_custom_call.1} parent=1 // pred_fallthru
      _
    // Predicated region
    $region14: #{tpu_custom_call.1} parent=1 // pred_check
      _
    $region15: #{tpu_custom_call.1} parent=1 // pred_check_branch
      %42 = sbr.rel (0) target = $region17
    $region16: #{tpu_custom_call.1} parent=1 // pred_region
      %s44 = ssub.s32 2048, 2048
      %45 = vsyncadd [#allocation6], %s44
      %s46 = sshll.u32 [#allocation7], 4
      %s47 = int_to_ptr.vmem [resolvable:$true] %s46
      %52 = dma.hbm_to_vmem [thread:$0]  %s3, 2048, %s47, [#allocation6], 128, 128, 8
    $region17: #{tpu_custom_call.1} parent=1 // pred_fallthru
      _
    // Predicated region
    $region18: #{tpu_custom_call.1} parent=1 // pred_check
      _
    $region19: #{tpu_custom_call.1} parent=1 // pred_check_branch
      %54 = sbr.rel (0) target = $region21
    $region20: #{tpu_custom_call.1} parent=1 // pred_region
      _
    $region21: #{tpu_custom_call.1} parent=1 // pred_fallthru
      _
    // Predicated region
    $region22: #{tpu_custom_call.1} parent=1 // pred_check
      _
    $region23: #{tpu_custom_call.1} parent=1 // pred_check_branch
      %56 = sbr.rel (0) target = $region25
    $region24: #{tpu_custom_call.1} parent=1 // pred_region
      _
    $region25: #{tpu_custom_call.1} parent=1 // pred_fallthru
      _
    // Predicated region
    $region26: #{tpu_custom_call.1} parent=1 // pred_check
      _
    $region27: #{tpu_custom_call.1} parent=1 // pred_check_branch
      %58 = sbr.rel (0) target = $region29
    $region28: #{tpu_custom_call.1} parent=1 // pred_region
      _
    $region29: #{tpu_custom_call.1} parent=1 // pred_fallthru
      _
    // Predicated region
    $region30: #{tpu_custom_call.1} parent=1 // pred_check
      _
    $region31: #{tpu_custom_call.1} parent=1 // pred_check_branch
      %60 = sbr.rel (0) target = $region33
    $region32: #{tpu_custom_call.1} parent=1 // pred_region
      %61 = dma.done [#allocation3], 256
    $region33: #{tpu_custom_call.1} parent=1 // pred_fallthru
      _
    // Predicated region
    $region34: #{tpu_custom_call.1} parent=1 // pred_check
      _
    $region35: #{tpu_custom_call.1} parent=1 // pred_check_branch
      %63 = sbr.rel (0) target = $region37
    $region36: #{tpu_custom_call.1} parent=1 // pred_region
      %64 = dma.done [#allocation6], 2048
    $region37: #{tpu_custom_call.1} parent=1 // pred_fallthru
      _
    // Predicated region
    $region38: #{tpu_custom_call.1} parent=1 // pred_check
      _
    $region39: #{tpu_custom_call.1} parent=1 // pred_check_branch
      %66 = sbr.rel (0) target = $region41
    $region40: #{tpu_custom_call.1} parent=1 // pred_region
      %67 = dma.done [#allocation6], 2048
    $region41: #{tpu_custom_call.1} parent=1 // pred_fallthru
      _
    %v69 = vld [vmem:[#allocation2] sm:$0xff]
    %v70 = vld [vmem:[#allocation2 + $0x8] sm:$0xff]
    %v71 = vpack.c.bf16 %v70, %v69
    %v72 = vld [vmem:[#allocation5] sm:$0xf]
    %v73 = vld [vmem:[#allocation5 + $0x4] sm:$0xf]
    %v74 = vld [vmem:[#allocation5 + $0x8] sm:$0xf]
    %v75 = vld [vmem:[#allocation5 + $0xc] sm:$0xf]
    %v76 = vld [vmem:[#allocation5 + $0x10] sm:$0xf]
    %v77 = vld [vmem:[#allocation5 + $0x14] sm:$0xf]
    %v78 = vld [vmem:[#allocation5 + $0x18] sm:$0xf]
    %v79 = vld [vmem:[#allocation5 + $0x1c] sm:$0xf]
    %v80 = vld [vmem:[#allocation5 + $0x20] sm:$0xf]
    %v81 = vld [vmem:[#allocation5 + $0x24] sm:$0xf]
    %v82 = vld [vmem:[#allocation5 + $0x28] sm:$0xf]
    %v83 = vld [vmem:[#allocation5 + $0x2c] sm:$0xf]
    %v84 = vld [vmem:[#allocation5 + $0x30] sm:$0xf]
    %v85 = vld [vmem:[#allocation5 + $0x34] sm:$0xf]
    %v86 = vld [vmem:[#allocation5 + $0x38] sm:$0xf]
    %v87 = vld [vmem:[#allocation5 + $0x3c] sm:$0xf]
    %v88 = vld [vmem:[#allocation5 + $0x40] sm:$0xf]
    %v89 = vld [vmem:[#allocation5 + $0x44] sm:$0xf]
    %v90 = vld [vmem:[#allocation5 + $0x48] sm:$0xf]
    %v91 = vld [vmem:[#allocation5 + $0x4c] sm:$0xf]
    %v92 = vld [vmem:[#allocation5 + $0x50] sm:$0xf]
    %v93 = vld [vmem:[#allocation5 + $0x54] sm:$0xf]
    %v94 = vld [vmem:[#allocation5 + $0x58] sm:$0xf]
    %v95 = vld [vmem:[#allocation5 + $0x5c] sm:$0xf]
    %v96 = vld [vmem:[#allocation5 + $0x60] sm:$0xf]
    %v97 = vld [vmem:[#allocation5 + $0x64] sm:$0xf]
    %v98 = vld [vmem:[#allocation5 + $0x68] sm:$0xf]
    %v99 = vld [vmem:[#allocation5 + $0x6c] sm:$0xf]
    %v100 = vld [vmem:[#allocation5 + $0x70] sm:$0xf]
    %v101 = vld [vmem:[#allocation5 + $0x74] sm:$0xf]
    %v102 = vld [vmem:[#allocation5 + $0x78] sm:$0xf]
    %v103 = vld [vmem:[#allocation5 + $0x7c] sm:$0xf]
    %v104 = vld [vmem:[%s2] sm:$0x3]
    %v106 = vlaneseq
    %v107 = vshrl.u32 %v106, 7
    %v108 = vsub.s32 0, %v107
    %v109 = vrot.slane %v104, %v108
    %v110 = vlaneseq
    %v111 = vshrl.u32 %v110, 7
    %v112 = vsub.s32 1, %v111
    %v113 = vrot.slane %v104, %v112
    %v148 = vunpack.c.l.b16 %v72
    %v149 = vunpack.c.l.b16 %v73
    %v150 = vunpack.c.l.b16 %v74
    %v151 = vunpack.c.l.b16 %v75
    %v152 = vunpack.c.l.b16 %v76
    %v153 = vunpack.c.l.b16 %v77
    %v154 = vunpack.c.l.b16 %v78
    %v155 = vunpack.c.l.b16 %v79
    %v156 = vunpack.c.l.b16 %v80
    %v157 = vunpack.c.l.b16 %v81
    %v158 = vunpack.c.l.b16 %v82
    %v159 = vunpack.c.l.b16 %v83
    %v160 = vunpack.c.l.b16 %v84
    %v161 = vunpack.c.l.b16 %v85
    %v162 = vunpack.c.l.b16 %v86
    %v163 = vunpack.c.l.b16 %v87
    %v164 = vunpack.c.l.b16 %v88
    %v165 = vunpack.c.l.b16 %v89
    %v166 = vunpack.c.l.b16 %v90
    %v167 = vunpack.c.l.b16 %v91
    %v168 = vunpack.c.l.b16 %v92
    %v169 = vunpack.c.l.b16 %v93
    %v170 = vunpack.c.l.b16 %v94
    %v171 = vunpack.c.l.b16 %v95
    %v172 = vunpack.c.l.b16 %v96
    %v173 = vunpack.c.l.b16 %v97
    %v174 = vunpack.c.l.b16 %v98
    %v175 = vunpack.c.l.b16 %v99
    %v176 = vunpack.c.l.b16 %v100
    %v177 = vunpack.c.l.b16 %v101
    %v178 = vunpack.c.l.b16 %v102
    %v179 = vunpack.c.l.b16 %v103
    %v180 = vpack.c.b16 %v149, %v148
    %v181 = vpack.c.b16 %v151, %v150
    %v182 = vpack.c.b16 %v153, %v152
    %v183 = vpack.c.b16 %v155, %v154
    %v184 = vpack.c.b16 %v157, %v156
    %v185 = vpack.c.b16 %v159, %v158
    %v186 = vpack.c.b16 %v161, %v160
    %v187 = vpack.c.b16 %v163, %v162
    %v188 = vpack.c.b16 %v165, %v164
    %v189 = vpack.c.b16 %v167, %v166
    %v190 = vpack.c.b16 %v169, %v168
    %v191 = vpack.c.b16 %v171, %v170
    %v192 = vpack.c.b16 %v173, %v172
    %v193 = vpack.c.b16 %v175, %v174
    %v194 = vpack.c.b16 %v177, %v176
    %v195 = vpack.c.b16 %v179, %v178
    %212 = vmatprep.subr.bf16.mxu0 0
    %213 = vmatpush1.bf16.xpose.msra.mxu0 %v187
    %214 = vmatprep.subr.bf16.mxu0 0
    %215 = vmatpush1.bf16.xpose.msra.mxu0 %v186
    %216 = vmatprep.subr.bf16.mxu0 0
    %217 = vmatpush1.bf16.xpose.msra.mxu0 %v185
    %218 = vmatprep.subr.bf16.mxu0 0
    %219 = vmatpush1.bf16.xpose.msra.mxu0 %v184
    %220 = vmatprep.subr.bf16.mxu0 0
    %221 = vmatpush1.bf16.xpose.msra.mxu0 %v183
    %222 = vmatprep.subr.bf16.mxu0 0
    %223 = vmatpush1.bf16.xpose.msra.mxu0 %v182
    %224 = vmatprep.subr.bf16.mxu0 0
    %225 = vmatpush1.bf16.xpose.msra.mxu0 %v181
    %226 = vmatprep.subr.bf16.mxu0 0
    %227 = vmatpush1.bf16.xpose.msra.mxu0 %v180
    %228 = vmatprep.subr.bf16.mxu0 0
    %229 = vmatpush2.bf16.xpose.msra.mxu0 %v195
    %230 = vmatprep.subr.bf16.mxu0 0
    %231 = vmatpush2.bf16.xpose.msra.mxu0 %v194
    %232 = vmatprep.subr.bf16.mxu0 0
    %233 = vmatpush2.bf16.xpose.msra.mxu0 %v193
    %234 = vmatprep.subr.bf16.mxu0 0
    %235 = vmatpush2.bf16.xpose.msra.mxu0 %v192
    %236 = vmatprep.subr.bf16.mxu0 0
    %237 = vmatpush2.bf16.xpose.msra.mxu0 %v191
    %238 = vmatprep.subr.bf16.mxu0 0
    %239 = vmatpush2.bf16.xpose.msra.mxu0 %v190
    %240 = vmatprep.subr.bf16.mxu0 0
    %241 = vmatpush2.bf16.xpose.msra.mxu0 %v189
    %242 = vmatprep.subr.bf16.mxu0 0
    %243 = vmatpush2.bf16.xpose.msra.mxu0 %v188
    %244 = vmatprep.mubr.bf16.mxu0 0
    %245 = vmatmul.mubr.bf16.gmra.mxu0 %v71
    %v246 = vpop.f32.mrf.mxu0
    %v247 = vadd.f32 %v109, %v246
    %v248 = vpop.f32.mrf.mxu0
    %v249 = vadd.f32 %v113, %v248
    %v250 = vpop.f32.mrf.mxu0
    %v251 = vadd.f32 %v109, %v250
    %v252 = vpop.f32.mrf.mxu0
    %v253 = vadd.f32 %v113, %v252
    %254 = vdwg.mxu0
    %v255 = vmax.f32 %v247, 0.0
    %v256 = vmax.f32 %v249, 0.0
    %v257 = vmax.f32 %v251, 0.0
    %v258 = vmax.f32 %v253, 0.0
    %v259 = vpack.c.bf16 %v257, %v255
    %v260 = vpack.c.bf16 %v258, %v256
    %v261 = vld [vmem:[#allocation7] sm:$0xff]
    %v262 = vld [vmem:[#allocation7 + $0x8] sm:$0xff]
    %v263 = vld [vmem:[#allocation7 + $0x10] sm:$0xff]
    %v264 = vld [vmem:[#allocation7 + $0x18] sm:$0xff]
    %v265 = vld [vmem:[#allocation7 + $0x20] sm:$0xff]
    %v266 = vld [vmem:[#allocation7 + $0x28] sm:$0xff]
    %v267 = vld [vmem:[#allocation7 + $0x30] sm:$0xff]
    %v268 = vld [vmem:[#allocation7 + $0x38] sm:$0xff]
    %v269 = vld [vmem:[#allocation7 + $0x40] sm:$0xff]
    %v270 = vld [vmem:[#allocation7 + $0x48] sm:$0xff]
    %v271 = vld [vmem:[#allocation7 + $0x50] sm:$0xff]
    %v272 = vld [vmem:[#allocation7 + $0x58] sm:$0xff]
    %v273 = vld [vmem:[#allocation7 + $0x60] sm:$0xff]
    %v274 = vld [vmem:[#allocation7 + $0x68] sm:$0xff]
    %v275 = vld [vmem:[#allocation7 + $0x70] sm:$0xff]
    %v276 = vld [vmem:[#allocation7 + $0x78] sm:$0xff]
    %v277 = vld [vmem:[%s4] sm:$0x1]
    %v279 = vlaneseq
    %v280 = vshrl.u32 %v279, 7
    %v281 = vsub.s32 0, %v280
    %v282 = vrot.slane %v277, %v281
    %v300 = vunpack.c.l.b16 %v261
    %v301 = vunpack.c.h.b16 %v261
    %v302 = vunpack.c.l.b16 %v262
    %v303 = vunpack.c.h.b16 %v262
    %v304 = vunpack.c.l.b16 %v263
    %v305 = vunpack.c.h.b16 %v263
    %v306 = vunpack.c.l.b16 %v264
    %v307 = vunpack.c.h.b16 %v264
    %v308 = vunpack.c.l.b16 %v265
    %v309 = vunpack.c.h.b16 %v265
    %v310 = vunpack.c.l.b16 %v266
    %v311 = vunpack.c.h.b16 %v266
    %v312 = vunpack.c.l.b16 %v267
    %v313 = vunpack.c.h.b16 %v267
    %v314 = vunpack.c.l.b16 %v268
    %v315 = vunpack.c.h.b16 %v268
    %v316 = vunpack.c.l.b16 %v269
    %v317 = vunpack.c.h.b16 %v269
    %v318 = vunpack.c.l.b16 %v270
    %v319 = vunpack.c.h.b16 %v270
    %v320 = vunpack.c.l.b16 %v271
    %v321 = vunpack.c.h.b16 %v271
    %v322 = vunpack.c.l.b16 %v272
    %v323 = vunpack.c.h.b16 %v272
    %v324 = vunpack.c.l.b16 %v273
    %v325 = vunpack.c.h.b16 %v273
    %v326 = vunpack.c.l.b16 %v274
    %v327 = vunpack.c.h.b16 %v274
    %v328 = vunpack.c.l.b16 %v275
    %v329 = vunpack.c.h.b16 %v275
    %v330 = vunpack.c.l.b16 %v276
    %v331 = vunpack.c.h.b16 %v276
    %v332 = vpack.c.b16 %v302, %v300
    %v333 = vpack.c.b16 %v303, %v301
    %v334 = vpack.c.b16 %v306, %v304
    %v335 = vpack.c.b16 %v307, %v305
    %v336 = vpack.c.b16 %v310, %v308
    %v337 = vpack.c.b16 %v311, %v309
    %v338 = vpack.c.b16 %v314, %v312
    %v339 = vpack.c.b16 %v315, %v313
    %v340 = vpack.c.b16 %v318, %v316
    %v341 = vpack.c.b16 %v319, %v317
    %v342 = vpack.c.b16 %v322, %v320
    %v343 = vpack.c.b16 %v323, %v321
    %v344 = vpack.c.b16 %v326, %v324
    %v345 = vpack.c.b16 %v327, %v325
    %v346 = vpack.c.b16 %v330, %v328
    %v347 = vpack.c.b16 %v331, %v329
    %364 = vmatprep.subr.bf16.mxu0 %v347
    %365 = vmatpush1.bf16.xpose.msra.mxu0 %v346
    %366 = vmatprep.subr.bf16.mxu0 %v345
    %367 = vmatpush1.bf16.xpose.msra.mxu0 %v344
    %368 = vmatprep.subr.bf16.mxu0 %v343
    %369 = vmatpush1.bf16.xpose.msra.mxu0 %v342
    %370 = vmatprep.subr.bf16.mxu0 %v341
    %371 = vmatpush1.bf16.xpose.msra.mxu0 %v340
    %372 = vmatprep.subr.bf16.mxu0 %v339
    %373 = vmatpush1.bf16.xpose.msra.mxu0 %v338
    %374 = vmatprep.subr.bf16.mxu0 %v337
    %375 = vmatpush1.bf16.xpose.msra.mxu0 %v336
    %376 = vmatprep.subr.bf16.mxu0 %v335
    %377 = vmatpush1.bf16.xpose.msra.mxu0 %v334
    %378 = vmatprep.subr.bf16.mxu0 %v333
    %379 = vmatpush1.bf16.xpose.msra.mxu0 %v332
    %380 = vmatprep.subr.bf16.mxu0 0
    %381 = vmatpush2.bf16.xpose.msra.mxu0 0
    %382 = vmatprep.subr.bf16.mxu0 0
    %383 = vmatpush2.bf16.xpose.msra.mxu0 0
    %384 = vmatprep.subr.bf16.mxu0 0
    %385 = vmatpush2.bf16.xpose.msra.mxu0 0
    %386 = vmatprep.subr.bf16.mxu0 0
    %387 = vmatpush2.bf16.xpose.msra.mxu0 0
    %388 = vmatprep.subr.bf16.mxu0 0
    %389 = vmatpush2.bf16.xpose.msra.mxu0 0
    %390 = vmatprep.subr.bf16.mxu0 0
    %391 = vmatpush2.bf16.xpose.msra.mxu0 0
    %392 = vmatprep.subr.bf16.mxu0 0
    %393 = vmatpush2.bf16.xpose.msra.mxu0 0
    %394 = vmatprep.subr.bf16.mxu0 0
    %395 = vmatpush2.bf16.xpose.msra.mxu0 0
    %396 = vmatprep.mubr.bf16.mxu0 %v260
    %397 = vmatmul.mubr.bf16.gmra.mxu0 %v259
    %v398 = vpop.f32.mrf.mxu0
    %v399 = vadd.f32 %v282, %v398
    %v400 = vpop.f32.mrf.mxu0
    %v401 = vpop.f32.mrf.mxu0
    %v402 = vadd.f32 %v282, %v401
    %v403 = vpop.f32.mrf.mxu0
    %404 = vdwg.mxu0
    %v405 = vadd.f32 %v69, %v399
    %v406 = vadd.f32 %v70, %v402
    %407 = vadd.xlane.f32.xlu0 %v405
    %v408 = vpop.xlane.xlu0 %407
    %409 = vadd.xlane.f32.xlu0 %v406
    %v410 = vpop.xlane.xlu0 %409
    %v411 = vrcp.pop 128.0
    %v412 = vmul.f32 %v408, %v411
    %v413 = vmul.f32 %v410, %v411
    %v414 = vsub.f32 %v405, %v412
    %v415 = vsub.f32 %v406, %v413
    %v416 = vmul.f32 %v414, %v414
    %v417 = vmul.f32 %v415, %v415
    %418 = vadd.xlane.f32.xlu0 %v416
    %v419 = vpop.xlane.xlu0 %418
    %420 = vadd.xlane.f32.xlu0 %v417
    %v421 = vpop.xlane.xlu0 %420
    %v422 = vmul.f32 %v419, %v411
    %v423 = vmul.f32 %v421, %v411
    %v424 = vadd.f32 %v422, 1e-05
    %v425 = vadd.f32 %v423, 1e-05
    %v426 = vrsqrt.pop %v424
    %v427 = vrsqrt.pop %v425
    %v428 = vmul.f32 %v414, %v426
    %v429 = vmul.f32 %v415, %v427
    %v430 = vld [vmem:[%s5] sm:$0x1]
    %v432 = vlaneseq
    %v433 = vshrl.u32 %v432, 7
    %v434 = vsub.s32 0, %v433
    %v435 = vrot.slane %v430, %v434
    %v437 = vmul.f32 %v428, %v435
    %v438 = vmul.f32 %v429, %v435
    %v439 = vld [vmem:[%s6] sm:$0x1]
    %v441 = vlaneseq
    %v442 = vshrl.u32 %v441, 7
    %v443 = vsub.s32 0, %v442
    %v444 = vrot.slane %v439, %v443
    %v446 = vadd.f32 %v437, %v444
    %v447 = vadd.f32 %v438, %v444
    %448 = vst [vmem:[#allocation8] sm:$0xff] %v446
    %449 = vst [vmem:[#allocation8 + $0x8] sm:$0xff] %v447
    // Predicated region
    $region42: #{tpu_custom_call.1} parent=1 // pred_check
      _
    $region43: #{tpu_custom_call.1} parent=1 // pred_check_branch
      %451 = sbr.rel (0) target = $region45
    $region44: #{tpu_custom_call.1} parent=1 // pred_region
      %s453 = ssub.s32 256, 256
      %454 = vsyncadd [#allocation4], %s453
      %s455 = sshll.u32 [#allocation8], 4
      %s456 = int_to_ptr.vmem [resolvable:$true] %s455
      %461 = dma.vmem_to_hbm [thread:$0]  %s456, 256, %s7, [#allocation4], 128, 128, 8
    $region45: #{tpu_custom_call.1} parent=1 // pred_fallthru
      _
    // Predicated region
    $region46: #{tpu_custom_call.1} parent=1 // pred_check
      _
    $region47: #{tpu_custom_call.1} parent=1 // pred_check_branch
      %463 = sbr.rel (0) target = $region49
    $region48: #{tpu_custom_call.1} parent=1 // pred_region
      %464 = dma.done [#allocation4], 256
    $region49: #{tpu_custom_call.1} parent=1 // pred_fallthru
      _
    %465 = vsyncpa [#allocation3], 1
    %466 = vsyncpa [#allocation6], 1
    %467 = vsyncpa [#allocation4], 1

</llo_original>
